<compile_context>
chip_gen: v7x
topology: tpu7x:2x2x1
jax: 0.10.0
libtpu: 0.0.40
codegen_flags: <defaults>
</compile_context>

<pallas_src>
import functools

import jax
import jax.numpy as jnp
import numpy as np
from jax import lax
from jax.experimental import pallas as pl
from jax.experimental.pallas import tpu as pltpu

MON_DEFAULTS = {"alpha": 1.0, "tol": 1e-05, "max_iter": 50}


def _round_up(x, m):
    return ((x + m - 1) // m) * m


def _mon_singlefc_kernel(x_ref, uwT_ref, ub_ref, miter_ref, mfin_ref,
                         woT_ref, wob_ref, out_ref, *, alpha, tol, max_iter):
    f32 = jnp.float32

    x = x_ref[...]                                                     # (tb, in_dim)
    bias = jnp.dot(x, uwT_ref[...], preferred_element_type=f32) + ub_ref[...]
    bias_a = alpha * bias                                              # alpha-folded bias
    M_iter = miter_ref[...]                                            # (1-a)I + a*M

    tol2 = jnp.float32(tol * tol)

    def cond(carry):
        _, d2, n2, it = carry
        # sqrt-free convergence test: ||zn-z||^2 > tol^2 * ||zn||^2  -> keep iterating.
        return jnp.logical_and(it < max_iter, d2 > tol2 * n2)

    def body(carry):
        z, _, _, it = carry
        zn = jnp.maximum(jnp.dot(z, M_iter, preferred_element_type=f32) + bias_a, 0.0)
        diff = zn - z
        d2 = jnp.sum(diff * diff)
        n2 = jnp.sum(zn * zn)
        return (zn, d2, n2, it + 1)

    z0 = jnp.zeros_like(bias)
    z, _, _, _ = lax.while_loop(
        cond, body,
        (z0, jnp.array(1.0, f32), jnp.array(0.0, f32), jnp.array(0, jnp.int32)))

    # Final (gradient-tracked in torch) pass: z* = ReLU(U(x) + W z), W z = z @ M.
    zf = jnp.maximum(bias + jnp.dot(z, mfin_ref[...], preferred_element_type=f32), 0.0)

    # Lane-dense linear head (padded to 128 output lanes).
    out_ref[...] = jnp.dot(zf, woT_ref[...], preferred_element_type=f32) + wob_ref[...]


def single_fc_net_forward(x, params, *, m=0.1, alpha=1.0, tol=1e-5, max_iter=50,
                          batch_tile=256):
    """Runs the full SingleFcNet forward inside one Pallas call."""
    B = x.shape[0]
    x2 = x.reshape(B, -1).astype(jnp.float32)            # torch: x.view(B, -1)
    in_dim = x2.shape[1]
    out_dim = params["U_w"].shape[0]
    n_classes = params["Wout_w"].shape[0]

    # ---- constant folding (one-time XLA work, outside the kernel) -----------------
    A = params["A_w"].astype(jnp.float32)
    Bw = params["B_w"].astype(jnp.float32)
    I = jnp.eye(out_dim, dtype=jnp.float32)
    M = (1.0 - m) * I - A.T @ A + Bw.T - Bw               # W z == z @ M
    M_iter = (1.0 - alpha) * I + alpha * M                # fused iteration matrix

    UwT = params["U_w"].T.astype(jnp.float32)             # (in_dim, out_dim)
    Ub = params["U_b"].reshape(1, out_dim).astype(jnp.float32)

    # Lane-dense head: pad the n_classes-wide output to a full 128-lane slab.
    n_pad = _round_up(max(n_classes, 1), 128)
    WoT = jnp.zeros((out_dim, n_pad), jnp.float32).at[:, :n_classes].set(
        params["Wout_w"].T.astype(jnp.float32))
    Wob = jnp.zeros((1, n_pad), jnp.float32).at[:, :n_classes].set(
        params["Wout_b"].astype(jnp.float32))

    # ---- batch tiling (parallel grid axis) ----------------------------------------
    tile_b = min(batch_tile, _round_up(B, 8))
    B_pad = _round_up(B, tile_b)
    if B_pad != B:
        x2 = jnp.pad(x2, ((0, B_pad - B), (0, 0)))
    grid = (B_pad // tile_b,)

    kernel = functools.partial(_mon_singlefc_kernel,
                               alpha=float(alpha), tol=float(tol),
                               max_iter=int(max_iter))

    # Advisory cost estimate (worst-case: max_iter loop trips).
    flops = grid[0] * (2 * tile_b * in_dim * out_dim
                       + (max_iter + 1) * 2 * tile_b * out_dim * out_dim
                       + 2 * tile_b * out_dim * n_pad)
    bytes_accessed = 4 * (x2.size + B_pad * n_pad
                          + grid[0] * (UwT.size + Ub.size + 2 * out_dim * out_dim
                                       + WoT.size + Wob.size))

    out = pl.pallas_call(
        kernel,
        out_shape=jax.ShapeDtypeStruct((B_pad, n_pad), jnp.float32),
        grid_spec=pltpu.PrefetchScalarGridSpec(
            num_scalar_prefetch=0,
            grid=grid,
            in_specs=[
                pl.BlockSpec((tile_b, in_dim), lambda i: (i, 0)),     # x tile
                pl.BlockSpec((in_dim, out_dim), lambda i: (0, 0)),    # U^T (resident)
                pl.BlockSpec((1, out_dim), lambda i: (0, 0)),         # U bias
                pl.BlockSpec((out_dim, out_dim), lambda i: (0, 0)),   # M_iter
                pl.BlockSpec((out_dim, out_dim), lambda i: (0, 0)),   # M (final pass)
                pl.BlockSpec((out_dim, n_pad), lambda i: (0, 0)),     # Wout^T padded
                pl.BlockSpec((1, n_pad), lambda i: (0, 0)),           # Wout bias padded
            ],
            out_specs=pl.BlockSpec((tile_b, n_pad), lambda i: (i, 0)),
        ),
        compiler_params=pltpu.CompilerParams(dimension_semantics=("parallel",)),
        cost_estimate=pl.CostEstimate(flops=int(flops), transcendentals=0,
                                      bytes_accessed=int(bytes_accessed)),
    )(x2, UwT, Ub, M_iter, M, WoT, Wob)

    return out[:B, :n_classes]


def init_params(key, in_dim, out_dim, n_classes=10):
    """Deterministic synthetic init (PyTorch-style uniform fan-in bounds)."""
    ks = jax.random.split(key, 6)

    def unif(k, shape, bound):
        return jax.random.uniform(k, shape, jnp.float32, -bound, bound)

    scale = 0.05
    return {
        "U_w": unif(ks[0], (out_dim, in_dim), 1.0 / np.sqrt(in_dim)),
        "U_b": unif(ks[1], (out_dim,), 1.0 / np.sqrt(in_dim)),
        "A_w": unif(ks[2], (out_dim, out_dim), 1.0 / np.sqrt(out_dim)) * scale,
        "B_w": unif(ks[3], (out_dim, out_dim), 1.0 / np.sqrt(out_dim)) * scale,
        "Wout_w": unif(ks[4], (n_classes, out_dim), 1.0 / np.sqrt(out_dim)),
        "Wout_b": unif(ks[5], (n_classes,), 1.0 / np.sqrt(out_dim)),
    }


def single_fc_net_reference(x, params, *, m=0.1, alpha=1.0, tol=1e-5, max_iter=50):
    """Pure-JAX reference mirroring the torch forward (for correctness check)."""
    B = x.shape[0]
    xf = x.reshape(B, -1).astype(jnp.float32)
    Uw, Ub = params["U_w"], params["U_b"]
    A, Bw = params["A_w"], params["B_w"]
    bias = xf @ Uw.T + Ub

    def W_mul(z):
        return (1.0 - m) * z - (z @ A.T) @ A + z @ Bw.T - z @ Bw

    z = jnp.zeros_like(bias)
    err = 1.0
    it = 0
    while err > tol and it < max_iter:
        zn = jax.nn.relu((1.0 - alpha) * z + alpha * (W_mul(z) + bias))
        err = float(jnp.linalg.norm(zn - z) / (jnp.linalg.norm(zn) + 1e-6))
        z = zn
        it += 1
    zn = jax.nn.relu(bias + W_mul(z))
    return zn @ params["Wout_w"].T + params["Wout_b"]


if __name__ == "__main__":
    key = jax.random.PRNGKey(0)
    k_x, k_p = jax.random.split(key)

    # Small shapes consistent with the module: NCHW image flattened to in_dim.
    batch, C, H, W = 8, 1, 16, 16
    in_dim, out_dim = C * H * W, 128

    x = jax.random.normal(k_x, (batch, C, H, W), dtype=jnp.float32)
    params = init_params(k_p, in_dim, out_dim, n_classes=10)

    out = single_fc_net_forward(x, params, **{"m": 0.1, **MON_DEFAULTS})
    out = jax.block_until_ready(out)
    assert out.shape == (batch, 10) and out.dtype == jnp.float32

    ref = single_fc_net_reference(x, params, **{"m": 0.1, **MON_DEFAULTS})
    np.testing.assert_allclose(np.asarray(out), np.asarray(ref), rtol=2e-2, atol=2e-2)

    print("KERNEL_OK")
</pallas_src>

<mosaic_0001>
module attributes {stable_mosaic.version = 11 : i64} {
  func.func @_mon_singlefc_kernel(%arg0: i32, %arg1: memref<8x256xf32, #tpu.memory_space<vmem>>, %arg2: memref<256x128xf32, #tpu.memory_space<vmem>>, %arg3: memref<1x128xf32, #tpu.memory_space<vmem>>, %arg4: memref<128x128xf32, #tpu.memory_space<vmem>>, %arg5: memref<128x128xf32, #tpu.memory_space<vmem>>, %arg6: memref<128x128xf32, #tpu.memory_space<vmem>>, %arg7: memref<1x128xf32, #tpu.memory_space<vmem>>, %arg8: memref<8x128xf32, #tpu.memory_space<vmem>>) attributes {dimension_semantics = [#tpu.dimension_semantics<parallel>], iteration_bounds = array<i64: 1>, scalar_prefetch = 0 : i64, scratch_operands = 0 : i64, tpu.core_type = #tpu.core_type<tc>, window_params = [{transform_indices = @transform_0, window_bounds = array<i64: 8, 256>}, {pipeline_mode = #tpu.pipeline_mode<synchronous>, transform_indices = @transform_1, window_bounds = array<i64: 256, 128>}, {pipeline_mode = #tpu.pipeline_mode<synchronous>, transform_indices = @transform_2, window_bounds = array<i64: 1, 128>}, {pipeline_mode = #tpu.pipeline_mode<synchronous>, transform_indices = @transform_3, window_bounds = array<i64: 128, 128>}, {pipeline_mode = #tpu.pipeline_mode<synchronous>, transform_indices = @transform_4, window_bounds = array<i64: 128, 128>}, {pipeline_mode = #tpu.pipeline_mode<synchronous>, transform_indices = @transform_5, window_bounds = array<i64: 128, 128>}, {pipeline_mode = #tpu.pipeline_mode<synchronous>, transform_indices = @transform_6, window_bounds = array<i64: 1, 128>}, {transform_indices = @transform_7, window_bounds = array<i64: 8, 128>}]} {
    %c0 = arith.constant 0 : index
    %c0_0 = arith.constant 0 : index
    %0 = vector.load %arg1[%c0, %c0_0] : memref<8x256xf32, #tpu.memory_space<vmem>>, vector<8x256xf32>
    %c0_1 = arith.constant 0 : index
    %c0_2 = arith.constant 0 : index
    %1 = vector.load %arg2[%c0_1, %c0_2] : memref<256x128xf32, #tpu.memory_space<vmem>>, vector<256x128xf32>
    %cst = arith.constant dense<0.000000e+00> : vector<8x128xf32>
    %2 = tpu.matmul %0, %1, %cst {dimension_numbers = #tpu.dot_dimension_numbers<[1], [0], [0], [1], [0, 0, 1, 1], [], []>} : vector<8x256xf32>, vector<256x128xf32>, vector<8x128xf32> -> vector<8x128xf32>
    %c0_3 = arith.constant 0 : index
    %c0_4 = arith.constant 0 : index
    %3 = vector.load %arg3[%c0_3, %c0_4] : memref<1x128xf32, #tpu.memory_space<vmem>>, vector<1x128xf32>
    %4 = vector.broadcast %3 : vector<1x128xf32> to vector<8x128xf32>
    %5 = arith.addf %2, %4 : vector<8x128xf32>
    %cst_5 = arith.constant 1.000000e+00 : f32
    %6 = vector.broadcast %cst_5 : f32 to vector<8x128xf32>
    %7 = arith.mulf %6, %5 : vector<8x128xf32>
    %c0_6 = arith.constant 0 : index
    %c0_7 = arith.constant 0 : index
    %8 = vector.load %arg4[%c0_6, %c0_7] : memref<128x128xf32, #tpu.memory_space<vmem>>, vector<128x128xf32>
    %cst_8 = arith.constant 0.000000e+00 : f32
    %9 = vector.broadcast %cst_8 : f32 to vector<8x128xf32>
    %cst_9 = arith.constant 1.000000e-10 : f32
    %cst_10 = arith.constant 1.000000e+00 : f32
    %cst_11 = arith.constant 0.000000e+00 : f32
    %c0_i32 = arith.constant 0 : i32
    %10:4 = scf.while (%arg9 = %9, %arg10 = %cst_10, %arg11 = %cst_11, %arg12 = %c0_i32) : (vector<8x128xf32>, f32, f32, i32) -> (vector<8x128xf32>, f32, f32, i32) {
      %c50_i32 = arith.constant 50 : i32
      %22 = arith.cmpi slt, %arg12, %c50_i32 : i32
      %23 = arith.mulf %cst_9, %arg11 : f32
      %24 = arith.cmpf ogt, %arg10, %23 : f32
      %25 = arith.andi %22, %24 : i1
      scf.condition(%25) %arg9, %arg10, %arg11, %arg12 : vector<8x128xf32>, f32, f32, i32
    } do {
    ^bb0(%arg9: vector<8x128xf32>, %arg10: f32, %arg11: f32, %arg12: i32):
      %cst_23 = arith.constant dense<0.000000e+00> : vector<8x128xf32>
      %22 = tpu.matmul %arg9, %8, %cst_23 {dimension_numbers = #tpu.dot_dimension_numbers<[1], [0], [0], [1], [0, 0, 1, 1], [], []>} : vector<8x128xf32>, vector<128x128xf32>, vector<8x128xf32> -> vector<8x128xf32>
      %23 = arith.addf %22, %7 : vector<8x128xf32>
      %cst_24 = arith.constant 0.000000e+00 : f32
      %24 = vector.broadcast %cst_24 : f32 to vector<8x128xf32>
      %25 = arith.maximumf %23, %24 : vector<8x128xf32>
      %26 = arith.subf %25, %arg9 : vector<8x128xf32>
      %27 = arith.mulf %26, %26 : vector<8x128xf32>
      %28 = vector.shape_cast %27 : vector<8x128xf32> to vector<1x8x128xf32>
      %cst_25 = arith.constant dense<0.000000e+00> : vector<1xf32>
      %29 = vector.multi_reduction <add>, %28, %cst_25 [1, 2] : vector<1x8x128xf32> to vector<1xf32>
      %30 = vector.shape_cast %29 : vector<1xf32> to vector<1x1x1xf32>
      %31 = vector.extract %30[0, 0, 0] : f32 from vector<1x1x1xf32>
      %32 = arith.mulf %25, %25 : vector<8x128xf32>
      %33 = vector.shape_cast %32 : vector<8x128xf32> to vector<1x8x128xf32>
      %cst_26 = arith.constant dense<0.000000e+00> : vector<1xf32>
      %34 = vector.multi_reduction <add>, %33, %cst_26 [1, 2] : vector<1x8x128xf32> to vector<1xf32>
      %35 = vector.shape_cast %34 : vector<1xf32> to vector<1x1x1xf32>
      %36 = vector.extract %35[0, 0, 0] : f32 from vector<1x1x1xf32>
      %c1_i32 = arith.constant 1 : i32
      %37 = arith.addi %arg12, %c1_i32 : i32
      scf.yield %25, %31, %36, %37 : vector<8x128xf32>, f32, f32, i32
    }
    %c0_12 = arith.constant 0 : index
    %c0_13 = arith.constant 0 : index
    %11 = vector.load %arg5[%c0_12, %c0_13] : memref<128x128xf32, #tpu.memory_space<vmem>>, vector<128x128xf32>
    %cst_14 = arith.constant dense<0.000000e+00> : vector<8x128xf32>
    %12 = tpu.matmul %10#0, %11, %cst_14 {dimension_numbers = #tpu.dot_dimension_numbers<[1], [0], [0], [1], [0, 0, 1, 1], [], []>} : vector<8x128xf32>, vector<128x128xf32>, vector<8x128xf32> -> vector<8x128xf32>
    %13 = arith.addf %5, %12 : vector<8x128xf32>
    %cst_15 = arith.constant 0.000000e+00 : f32
    %14 = vector.broadcast %cst_15 : f32 to vector<8x128xf32>
    %15 = arith.maximumf %13, %14 : vector<8x128xf32>
    %c0_16 = arith.constant 0 : index
    %c0_17 = arith.constant 0 : index
    %16 = vector.load %arg6[%c0_16, %c0_17] : memref<128x128xf32, #tpu.memory_space<vmem>>, vector<128x128xf32>
    %cst_18 = arith.constant dense<0.000000e+00> : vector<8x128xf32>
    %17 = tpu.matmul %15, %16, %cst_18 {dimension_numbers = #tpu.dot_dimension_numbers<[1], [0], [0], [1], [0, 0, 1, 1], [], []>} : vector<8x128xf32>, vector<128x128xf32>, vector<8x128xf32> -> vector<8x128xf32>
    %c0_19 = arith.constant 0 : index
    %c0_20 = arith.constant 0 : index
    %18 = vector.load %arg7[%c0_19, %c0_20] : memref<1x128xf32, #tpu.memory_space<vmem>>, vector<1x128xf32>
    %19 = vector.broadcast %18 : vector<1x128xf32> to vector<8x128xf32>
    %20 = arith.addf %17, %19 : vector<8x128xf32>
    %c0_21 = arith.constant 0 : index
    %c0_22 = arith.constant 0 : index
    %21 = vector.load %arg8[%c0_21, %c0_22] : memref<8x128xf32, #tpu.memory_space<vmem>>, vector<8x128xf32>
    tpu.vector_store %arg8[%c0_21, %c0_22], %20 {strides = array<i32>} : memref<8x128xf32, #tpu.memory_space<vmem>>, vector<8x128xf32>,
    return
  }
  func.func @transform_0(%arg0: i32) -> (i32, i32) {
    %c0_i32 = arith.constant 0 : i32
    %c0_i32_0 = arith.constant 0 : i32
    return %arg0, %c0_i32 : i32, i32
  }
  func.func @transform_1(%arg0: i32) -> (i32, i32) {
    %c0_i32 = arith.constant 0 : i32
    %c0_i32_0 = arith.constant 0 : i32
    %c0_i32_1 = arith.constant 0 : i32
    return %c0_i32, %c0_i32_0 : i32, i32
  }
  func.func @transform_2(%arg0: i32) -> (i32, i32) {
    %c0_i32 = arith.constant 0 : i32
    %c0_i32_0 = arith.constant 0 : i32
    %c0_i32_1 = arith.constant 0 : i32
    return %c0_i32, %c0_i32_0 : i32, i32
  }
  func.func @transform_3(%arg0: i32) -> (i32, i32) {
    %c0_i32 = arith.constant 0 : i32
    %c0_i32_0 = arith.constant 0 : i32
    %c0_i32_1 = arith.constant 0 : i32
    return %c0_i32, %c0_i32_0 : i32, i32
  }
  func.func @transform_4(%arg0: i32) -> (i32, i32) {
    %c0_i32 = arith.constant 0 : i32
    %c0_i32_0 = arith.constant 0 : i32
    %c0_i32_1 = arith.constant 0 : i32
    return %c0_i32, %c0_i32_0 : i32, i32
  }
  func.func @transform_5(%arg0: i32) -> (i32, i32) {
    %c0_i32 = arith.constant 0 : i32
    %c0_i32_0 = arith.constant 0 : i32
    %c0_i32_1 = arith.constant 0 : i32
    return %c0_i32, %c0_i32_0 : i32, i32
  }
  func.func @transform_6(%arg0: i32) -> (i32, i32) {
    %c0_i32 = arith.constant 0 : i32
    %c0_i32_0 = arith.constant 0 : i32
    %c0_i32_1 = arith.constant 0 : i32
    return %c0_i32, %c0_i32_0 : i32, i32
  }
  func.func @transform_7(%arg0: i32) -> (i32, i32) {
    %c0_i32 = arith.constant 0 : i32
    %c0_i32_0 = arith.constant 0 : i32
    return %arg0, %c0_i32 : i32, i32
  }
}

</mosaic_0001>

<llo_original>
// kernel: tpu_custom_call.1
$region0: #{tpu_custom_call.1}
  #allocation0 [shape = 'u32[]', space=smem, size = 0x4, offset = 0x4, fixed_abs, tag = 'smem constant byte address 0x4 - core index']
  #allocation1 [shape = 'u32[144,128]{1,0:T(1,128)}', space=vmem, size = 0x12000, scoped, tag = 'internal scratch']
  %s0 = inlined_call_operand.hbm [shape: f32[8,256], index: 0, kind: input, shape index: {}]
  %s1 = inlined_call_operand.hbm [shape: f32[256,128], index: 1, kind: input, shape index: {}]
  %s2 = inlined_call_operand.vmem [shape: f32[1,128], index: 2, kind: input, shape index: {}]
  %s3 = inlined_call_operand.hbm [shape: f32[128,128], index: 3, kind: input, shape index: {}]
  %s4 = inlined_call_operand.hbm [shape: f32[128,128], index: 4, kind: input, shape index: {}]
  %s5 = inlined_call_operand.hbm [shape: f32[128,128], index: 5, kind: input, shape index: {}]
  %s6 = inlined_call_operand.vmem [shape: f32[1,128], index: 6, kind: input, shape index: {}]
  %s7 = inlined_call_operand.hbm [shape: f32[8,128], index: 7, kind: output, shape index: {}]
  %s8 = sld [smem:[#allocation0]]
  $region65: #{tpu_custom_call.1} parent=0
    _
  %s10 = ssub.s32 1, %s8
  %s11 = scalar_select 0, %s10, %s8
  $region1: #{tpu_custom_call.1} parent=0
    #allocation2 [shape = 'u8[8192]{0}', space=vmem, size = 0x2000, scoped, tag = 'input window, operand 0, single buffered']
    #allocation3 [shape = 's32[1]{0}', space=sflag, size = 0x4, scoped, tag = 'scoped memory for tpu_custom_call.1']
    #allocation4 [shape = 's32[1]{0}', space=sflag, size = 0x4, scoped, tag = 'scoped memory for tpu_custom_call.1']
    #allocation5 [shape = 'u8[131072]{0}', space=vmem, size = 0x20000, scoped, tag = 'input window, operand 1, single buffered']
    #allocation6 [shape = 's32[1]{0}', space=sflag, size = 0x4, scoped, tag = 'scoped memory for tpu_custom_call.1']
    #allocation7 [shape = 'u8[65536]{0}', space=vmem, size = 0x10000, scoped, tag = 'input window, operand 3, single buffered']
    #allocation8 [shape = 'u8[65536]{0}', space=vmem, size = 0x10000, scoped, tag = 'input window, operand 4, single buffered']
    #allocation9 [shape = 's32[1]{0}', space=sflag, size = 0x4, scoped, tag = 'scoped memory for tpu_custom_call.1']
    #allocation10 [shape = 'u8[65536]{0}', space=vmem, size = 0x10000, scoped, tag = 'input window, operand 5, single buffered']
    #allocation11 [shape = 'u8[4096]{0}', space=vmem, size = 0x1000, scoped, tag = 'output window, operand 0, single buffered']
    %12 = vsyncpa [#allocation3], 0
    %13 = vsyncpa [#allocation6], 0
    %14 = vsyncpa [#allocation9], 0
    %15 = vsyncpa [#allocation4], 0
    // Predicated region
    $region2: #{tpu_custom_call.1} parent=1 // pred_check
      _
    $region3: #{tpu_custom_call.1} parent=1 // pred_check_branch
      %17 = sbr.rel (0) target = $region5
    $region4: #{tpu_custom_call.1} parent=1 // pred_region
      %s19 = ssub.s32 256, 256
      %20 = vsyncadd [#allocation3], %s19
      %s22 = sshll.u32 [#allocation2], 4
      %s23 = int_to_ptr.vmem [resolvable:$true] %s22
      %25 = dma.hbm_to_vmem [thread:$0]  %s0, 256, %s23, [#allocation3]
    $region5: #{tpu_custom_call.1} parent=1 // pred_fallthru
      _
    // Predicated region
    $region6: #{tpu_custom_call.1} parent=1 // pred_check
      _
    $region7: #{tpu_custom_call.1} parent=1 // pred_check_branch
      %27 = sbr.rel (0) target = $region9
    $region8: #{tpu_custom_call.1} parent=1 // pred_region
      %s29 = ssub.s32 4096, 4096
      %30 = vsyncadd [#allocation6], %s29
      %s31 = sshll.u32 [#allocation5], 4
      %s32 = int_to_ptr.vmem [resolvable:$true] %s31
      %37 = dma.hbm_to_vmem [thread:$0]  %s1, 4096, %s32, [#allocation6], 128, 128, 8
    $region9: #{tpu_custom_call.1} parent=1 // pred_fallthru
      _
    // Predicated region
    $region10: #{tpu_custom_call.1} parent=1 // pred_check
      _
    $region11: #{tpu_custom_call.1} parent=1 // pred_check_branch
      %39 = sbr.rel (0) target = $region13
    $region12: #{tpu_custom_call.1} parent=1 // pred_region
      _
    $region13: #{tpu_custom_call.1} parent=1 // pred_fallthru
      _
    // Predicated region
    $region14: #{tpu_custom_call.1} parent=1 // pred_check
      _
    $region15: #{tpu_custom_call.1} parent=1 // pred_check_branch
      %41 = sbr.rel (0) target = $region17
    $region16: #{tpu_custom_call.1} parent=1 // pred_region
      %s43 = ssub.s32 2048, 2048
      %44 = vsyncadd [#allocation6], %s43
      %s45 = sshll.u32 [#allocation7], 4
      %s46 = int_to_ptr.vmem [resolvable:$true] %s45
      %51 = dma.hbm_to_vmem [thread:$0]  %s3, 2048, %s46, [#allocation6], 128, 128, 8
    $region17: #{tpu_custom_call.1} parent=1 // pred_fallthru
      _
    // Predicated region
    $region18: #{tpu_custom_call.1} parent=1 // pred_check
      _
    $region19: #{tpu_custom_call.1} parent=1 // pred_check_branch
      %53 = sbr.rel (0) target = $region21
    $region20: #{tpu_custom_call.1} parent=1 // pred_region
      %s55 = ssub.s32 2048, 2048
      %56 = vsyncadd [#allocation9], %s55
      %s57 = sshll.u32 [#allocation8], 4
      %s58 = int_to_ptr.vmem [resolvable:$true] %s57
      %63 = dma.hbm_to_vmem [thread:$0]  %s4, 2048, %s58, [#allocation9], 128, 128, 8
    $region21: #{tpu_custom_call.1} parent=1 // pred_fallthru
      _
    // Predicated region
    $region22: #{tpu_custom_call.1} parent=1 // pred_check
      _
    $region23: #{tpu_custom_call.1} parent=1 // pred_check_branch
      %65 = sbr.rel (0) target = $region25
    $region24: #{tpu_custom_call.1} parent=1 // pred_region
      %s67 = ssub.s32 2048, 2048
      %68 = vsyncadd [#allocation9], %s67
      %s69 = sshll.u32 [#allocation10], 4
      %s70 = int_to_ptr.vmem [resolvable:$true] %s69
      %75 = dma.hbm_to_vmem [thread:$0]  %s5, 2048, %s70, [#allocation9], 128, 128, 8
    $region25: #{tpu_custom_call.1} parent=1 // pred_fallthru
      _
    // Predicated region
    $region26: #{tpu_custom_call.1} parent=1 // pred_check
      _
    $region27: #{tpu_custom_call.1} parent=1 // pred_check_branch
      %77 = sbr.rel (0) target = $region29
    $region28: #{tpu_custom_call.1} parent=1 // pred_region
      _
    $region29: #{tpu_custom_call.1} parent=1 // pred_fallthru
      _
    // Predicated region
    $region30: #{tpu_custom_call.1} parent=1 // pred_check
      _
    $region31: #{tpu_custom_call.1} parent=1 // pred_check_branch
      %79 = sbr.rel (0) target = $region33
    $region32: #{tpu_custom_call.1} parent=1 // pred_region
      %80 = dma.done [#allocation3], 256
    $region33: #{tpu_custom_call.1} parent=1 // pred_fallthru
      _
    // Predicated region
    $region34: #{tpu_custom_call.1} parent=1 // pred_check
      _
    $region35: #{tpu_custom_call.1} parent=1 // pred_check_branch
      %82 = sbr.rel (0) target = $region37
    $region36: #{tpu_custom_call.1} parent=1 // pred_region
      %83 = dma.done [#allocation6], 4096
    $region37: #{tpu_custom_call.1} parent=1 // pred_fallthru
      _
    // Predicated region
    $region38: #{tpu_custom_call.1} parent=1 // pred_check
      _
    $region39: #{tpu_custom_call.1} parent=1 // pred_check_branch
      %85 = sbr.rel (0) target = $region41
    $region40: #{tpu_custom_call.1} parent=1 // pred_region
      %86 = dma.done [#allocation6], 2048
    $region41: #{tpu_custom_call.1} parent=1 // pred_fallthru
      _
    // Predicated region
    $region42: #{tpu_custom_call.1} parent=1 // pred_check
      _
    $region43: #{tpu_custom_call.1} parent=1 // pred_check_branch
      %88 = sbr.rel (0) target = $region45
    $region44: #{tpu_custom_call.1} parent=1 // pred_region
      %89 = dma.done [#allocation9], 2048
    $region45: #{tpu_custom_call.1} parent=1 // pred_fallthru
      _
    // Predicated region
    $region46: #{tpu_custom_call.1} parent=1 // pred_check
      _
    $region47: #{tpu_custom_call.1} parent=1 // pred_check_branch
      %91 = sbr.rel (0) target = $region49
    $region48: #{tpu_custom_call.1} parent=1 // pred_region
      %92 = dma.done [#allocation9], 2048
    $region49: #{tpu_custom_call.1} parent=1 // pred_fallthru
      _
    %v93 = vld [vmem:[#allocation2] sm:$0xff]
    %v94 = vld [vmem:[#allocation2 + $0x8] sm:$0xff]
    %v95 = vld [vmem:[#allocation5] sm:$0xff]
    %v96 = vld [vmem:[#allocation5 + $0x8] sm:$0xff]
    %v97 = vld [vmem:[#allocation5 + $0x10] sm:$0xff]
    %v98 = vld [vmem:[#allocation5 + $0x18] sm:$0xff]
    %v99 = vld [vmem:[#allocation5 + $0x20] sm:$0xff]
    %v100 = vld [vmem:[#allocation5 + $0x28] sm:$0xff]
    %v101 = vld [vmem:[#allocation5 + $0x30] sm:$0xff]
    %v102 = vld [vmem:[#allocation5 + $0x38] sm:$0xff]
    %v103 = vld [vmem:[#allocation5 + $0x40] sm:$0xff]
    %v104 = vld [vmem:[#allocation5 + $0x48] sm:$0xff]
    %v105 = vld [vmem:[#allocation5 + $0x50] sm:$0xff]
    %v106 = vld [vmem:[#allocation5 + $0x58] sm:$0xff]
    %v107 = vld [vmem:[#allocation5 + $0x60] sm:$0xff]
    %v108 = vld [vmem:[#allocation5 + $0x68] sm:$0xff]
    %v109 = vld [vmem:[#allocation5 + $0x70] sm:$0xff]
    %v110 = vld [vmem:[#allocation5 + $0x78] sm:$0xff]
    %v111 = vld [vmem:[#allocation5 + $0x80] sm:$0xff]
    %v112 = vld [vmem:[#allocation5 + $0x88] sm:$0xff]
    %v113 = vld [vmem:[#allocation5 + $0x90] sm:$0xff]
    %v114 = vld [vmem:[#allocation5 + $0x98] sm:$0xff]
    %v115 = vld [vmem:[#allocation5 + $0xa0] sm:$0xff]
    %v116 = vld [vmem:[#allocation5 + $0xa8] sm:$0xff]
    %v117 = vld [vmem:[#allocation5 + $0xb0] sm:$0xff]
    %v118 = vld [vmem:[#allocation5 + $0xb8] sm:$0xff]
    %v119 = vld [vmem:[#allocation5 + $0xc0] sm:$0xff]
    %v120 = vld [vmem:[#allocation5 + $0xc8] sm:$0xff]
    %v121 = vld [vmem:[#allocation5 + $0xd0] sm:$0xff]
    %v122 = vld [vmem:[#allocation5 + $0xd8] sm:$0xff]
    %v123 = vld [vmem:[#allocation5 + $0xe0] sm:$0xff]
    %v124 = vld [vmem:[#allocation5 + $0xe8] sm:$0xff]
    %v125 = vld [vmem:[#allocation5 + $0xf0] sm:$0xff]
    %v126 = vld [vmem:[#allocation5 + $0xf8] sm:$0xff]
    %v127 = vld [vmem:[%s2] sm:$0x1]
    %v129 = vlaneseq
    %v130 = vshrl.u32 %v129, 7
    %v131 = vsub.s32 0, %v130
    %v132 = vrot.slane %v127, %v131
    %134 = vmatprep.subr.mxu0 0.0
    %135 = vmatpush1.msra.mxu0 %v95
    %136 = vmatprep.subr.mxu0 0.0
    %137 = vmatpush1.msra.mxu0 %v96
    %138 = vmatprep.subr.mxu0 0.0
    %139 = vmatpush1.msra.mxu0 %v97
    %140 = vmatprep.subr.mxu0 0.0
    %141 = vmatpush1.msra.mxu0 %v98
    %142 = vmatprep.subr.mxu0 0.0
    %143 = vmatpush1.msra.mxu0 %v99
    %144 = vmatprep.subr.mxu0 0.0
    %145 = vmatpush1.msra.mxu0 %v100
    %146 = vmatprep.subr.mxu0 0.0
    %147 = vmatpush1.msra.mxu0 %v101
    %148 = vmatprep.subr.mxu0 0.0
    %149 = vmatpush1.msra.mxu0 %v102
    %150 = vmatprep.subr.mxu0 0.0
    %151 = vmatpush1.msra.mxu0 %v103
    %152 = vmatprep.subr.mxu0 0.0
    %153 = vmatpush1.msra.mxu0 %v104
    %154 = vmatprep.subr.mxu0 0.0
    %155 = vmatpush1.msra.mxu0 %v105
    %156 = vmatprep.subr.mxu0 0.0
    %157 = vmatpush1.msra.mxu0 %v106
    %158 = vmatprep.subr.mxu0 0.0
    %159 = vmatpush1.msra.mxu0 %v107
    %160 = vmatprep.subr.mxu0 0.0
    %161 = vmatpush1.msra.mxu0 %v108
    %162 = vmatprep.subr.mxu0 0.0
    %163 = vmatpush1.msra.mxu0 %v109
    %164 = vmatprep.subr.mxu0 0.0
    %165 = vmatpush1.msra.mxu0 %v110
    %166 = vmatprep.subr.mxu0 0.0
    %167 = vmatpush1.msra.mxu0 %v111
    %168 = vmatprep.subr.mxu0 0.0
    %169 = vmatpush1.msra.mxu0 %v112
    %170 = vmatprep.subr.mxu0 0.0
    %171 = vmatpush1.msra.mxu0 %v113
    %172 = vmatprep.subr.mxu0 0.0
    %173 = vmatpush1.msra.mxu0 %v114
    %174 = vmatprep.subr.mxu0 0.0
    %175 = vmatpush1.msra.mxu0 %v115
    %176 = vmatprep.subr.mxu0 0.0
    %177 = vmatpush1.msra.mxu0 %v116
    %178 = vmatprep.subr.mxu0 0.0
    %179 = vmatpush1.msra.mxu0 %v117
    %180 = vmatprep.subr.mxu0 0.0
    %181 = vmatpush1.msra.mxu0 %v118
    %182 = vmatprep.subr.mxu0 0.0
    %183 = vmatpush1.msra.mxu0 %v119
    %184 = vmatprep.subr.mxu0 0.0
    %185 = vmatpush1.msra.mxu0 %v120
    %186 = vmatprep.subr.mxu0 0.0
    %187 = vmatpush1.msra.mxu0 %v121
    %188 = vmatprep.subr.mxu0 0.0
    %189 = vmatpush1.msra.mxu0 %v122
    %190 = vmatprep.subr.mxu0 0.0
    %191 = vmatpush1.msra.mxu0 %v123
    %192 = vmatprep.subr.mxu0 0.0
    %193 = vmatpush1.msra.mxu0 %v124
    %194 = vmatprep.subr.mxu0 0.0
    %195 = vmatpush1.msra.mxu0 %v125
    %196 = vmatprep.subr.mxu0 0.0
    %197 = vmatpush1.msra.mxu0 %v126
    %198 = vmatprep.mubr.f32.mxu0 %v94
    %199 = vmatmul.mubr.f32.gmra.mrb[0].mxu0 %v93
    %v200 = vpop.f32.mrb[0].mxu0
    %v201 = vadd.f32 %v132, %v200
    %v202 = vpop.f32.mrb[0].mxu0
    %203 = vdwg.mxu0
    %v204 = vld [vmem:[#allocation7] sm:$0xff]
    %v205 = vld [vmem:[#allocation7 + $0x8] sm:$0xff]
    %v206 = vld [vmem:[#allocation7 + $0x10] sm:$0xff]
    %v207 = vld [vmem:[#allocation7 + $0x18] sm:$0xff]
    %v208 = vld [vmem:[#allocation7 + $0x20] sm:$0xff]
    %v209 = vld [vmem:[#allocation7 + $0x28] sm:$0xff]
    %v210 = vld [vmem:[#allocation7 + $0x30] sm:$0xff]
    %v211 = vld [vmem:[#allocation7 + $0x38] sm:$0xff]
    %v212 = vld [vmem:[#allocation7 + $0x40] sm:$0xff]
    %v213 = vld [vmem:[#allocation7 + $0x48] sm:$0xff]
    %v214 = vld [vmem:[#allocation7 + $0x50] sm:$0xff]
    %v215 = vld [vmem:[#allocation7 + $0x58] sm:$0xff]
    %v216 = vld [vmem:[#allocation7 + $0x60] sm:$0xff]
    %v217 = vld [vmem:[#allocation7 + $0x68] sm:$0xff]
    %v218 = vld [vmem:[#allocation7 + $0x70] sm:$0xff]
    %v219 = vld [vmem:[#allocation7 + $0x78] sm:$0xff]
    // While loop
    $region50: #{tpu_custom_call.1} parent=1 // loop_pre_header
      _
    $region51: #{tpu_custom_call.1} parent=1 // loop_header
      %v221 = vphi 0.0, %v302
      %s222 = sphi 1.0, %s313
      %s223 = sphi 0.0, %s323
      %s224 = sphi 0, %s324
      %p225 = scmp.lt.s32.totalorder %s224, 50
      %s226 = smul.f32 %s223, 1e-10
      %p227 = scmp.gt.f32.partialorder %s222, %s226
      %p228 = pnand %p225, %p227
      %p229 = pneg %p228
    $region52: #{tpu_custom_call.1} parent=1 // loop_header_branch
      %231 = sbr.rel (%p228) target = $region56
    $region53: #{tpu_custom_call.1} parent=1 // loop_body
      %232 = vmatprep.subr.mxu0 0.0
      %233 = vmatpush1.msra.mxu0 %v204
      %234 = vmatprep.subr.mxu0 0.0
      %235 = vmatpush1.msra.mxu0 %v205
      %236 = vmatprep.subr.mxu0 0.0
      %237 = vmatpush1.msra.mxu0 %v206
      %238 = vmatprep.subr.mxu0 0.0
      %239 = vmatpush1.msra.mxu0 %v207
      %240 = vmatprep.subr.mxu0 0.0
      %241 = vmatpush1.msra.mxu0 %v208
      %242 = vmatprep.subr.mxu0 0.0
      %243 = vmatpush1.msra.mxu0 %v209
      %244 = vmatprep.subr.mxu0 0.0
      %245 = vmatpush1.msra.mxu0 %v210
      %246 = vmatprep.subr.mxu0 0.0
      %247 = vmatpush1.msra.mxu0 %v211
      %248 = vmatprep.subr.mxu0 0.0
      %249 = vmatpush1.msra.mxu0 %v212
      %250 = vmatprep.subr.mxu0 0.0
      %251 = vmatpush1.msra.mxu0 %v213
      %252 = vmatprep.subr.mxu0 0.0
      %253 = vmatpush1.msra.mxu0 %v214
      %254 = vmatprep.subr.mxu0 0.0
      %255 = vmatpush1.msra.mxu0 %v215
      %256 = vmatprep.subr.mxu0 0.0
      %257 = vmatpush1.msra.mxu0 %v216
      %258 = vmatprep.subr.mxu0 0.0
      %259 = vmatpush1.msra.mxu0 %v217
      %260 = vmatprep.subr.mxu0 0.0
      %261 = vmatpush1.msra.mxu0 %v218
      %262 = vmatprep.subr.mxu0 0.0
      %263 = vmatpush1.msra.mxu0 %v219
      %264 = vmatprep.subr.mxu0 0.0
      %265 = vmatpush1.msra.mxu0 0.0
      %266 = vmatprep.subr.mxu0 0.0
      %267 = vmatpush1.msra.mxu0 0.0
      %268 = vmatprep.subr.mxu0 0.0
      %269 = vmatpush1.msra.mxu0 0.0
      %270 = vmatprep.subr.mxu0 0.0
      %271 = vmatpush1.msra.mxu0 0.0
      %272 = vmatprep.subr.mxu0 0.0
      %273 = vmatpush1.msra.mxu0 0.0
      %274 = vmatprep.subr.mxu0 0.0
      %275 = vmatpush1.msra.mxu0 0.0
      %276 = vmatprep.subr.mxu0 0.0
      %277 = vmatpush1.msra.mxu0 0.0
      %278 = vmatprep.subr.mxu0 0.0
      %279 = vmatpush1.msra.mxu0 0.0
      %280 = vmatprep.subr.mxu0 0.0
      %281 = vmatpush1.msra.mxu0 0.0
      %282 = vmatprep.subr.mxu0 0.0
      %283 = vmatpush1.msra.mxu0 0.0
      %284 = vmatprep.subr.mxu0 0.0
      %285 = vmatpush1.msra.mxu0 0.0
      %286 = vmatprep.subr.mxu0 0.0
      %287 = vmatpush1.msra.mxu0 0.0
      %288 = vmatprep.subr.mxu0 0.0
      %289 = vmatpush1.msra.mxu0 0.0
      %290 = vmatprep.subr.mxu0 0.0
      %291 = vmatpush1.msra.mxu0 0.0
      %292 = vmatprep.subr.mxu0 0.0
      %293 = vmatpush1.msra.mxu0 0.0
      %294 = vmatprep.subr.mxu0 0.0
      %295 = vmatpush1.msra.mxu0 0.0
      %296 = vmatprep.mubr.f32.mxu0 0.0
      %297 = vmatmul.mubr.f32.gmra.mrb[0].mxu0 %v221
      %v298 = vpop.f32.mrb[0].mxu0
      %v299 = vadd.f32 %v201, %v298
      %v300 = vpop.f32.mrb[0].mxu0
      %301 = vdwg.mxu0
      %v302 = vmax.f32 %v299, 0.0
      %v303 = vsub.f32 %v302, %v221
      %v304 = vmul.f32 %v303, %v303
      %305 = vadd.xlane.f32.xlu0 %v304
      %v306 = vpop.xlane.xlu0 %305
      %v307 = vrot.slane %v306, 4
      %v308 = vadd.f32 %v306, %v307
      %v309 = vrot.slane %v308, 2
      %v310 = vadd.f32 %v308, %v309
      %v311 = vrot.slane %v310, 1
      %v312 = vadd.f32 %v310, %v311
      %s313 = vtos %v312
      %v314 = vmul.f32 %v302, %v302
      %315 = vadd.xlane.f32.xlu0 %v314
      %v316 = vpop.xlane.xlu0 %315
      %v317 = vrot.slane %v316, 4
      %v318 = vadd.f32 %v316, %v317
      %v319 = vrot.slane %v318, 2
      %v320 = vadd.f32 %v318, %v319
      %v321 = vrot.slane %v320, 1
      %v322 = vadd.f32 %v320, %v321
      %s323 = vtos %v322
      %s324 = sadd.s32 %s224, 1
    $region54: #{tpu_custom_call.1} parent=1 // loop_footer
      _
    $region55: #{tpu_custom_call.1} parent=1 // loop_footer_branch
      %220 = sbr.rel target = $region51
    $region56: #{tpu_custom_call.1} parent=1 // loop_exit
      _
    %v325 = vld [vmem:[#allocation8] sm:$0xff]
    %v326 = vld [vmem:[#allocation8 + $0x8] sm:$0xff]
    %v327 = vld [vmem:[#allocation8 + $0x10] sm:$0xff]
    %v328 = vld [vmem:[#allocation8 + $0x18] sm:$0xff]
    %v329 = vld [vmem:[#allocation8 + $0x20] sm:$0xff]
    %v330 = vld [vmem:[#allocation8 + $0x28] sm:$0xff]
    %v331 = vld [vmem:[#allocation8 + $0x30] sm:$0xff]
    %v332 = vld [vmem:[#allocation8 + $0x38] sm:$0xff]
    %v333 = vld [vmem:[#allocation8 + $0x40] sm:$0xff]
    %v334 = vld [vmem:[#allocation8 + $0x48] sm:$0xff]
    %v335 = vld [vmem:[#allocation8 + $0x50] sm:$0xff]
    %v336 = vld [vmem:[#allocation8 + $0x58] sm:$0xff]
    %v337 = vld [vmem:[#allocation8 + $0x60] sm:$0xff]
    %v338 = vld [vmem:[#allocation8 + $0x68] sm:$0xff]
    %v339 = vld [vmem:[#allocation8 + $0x70] sm:$0xff]
    %v340 = vld [vmem:[#allocation8 + $0x78] sm:$0xff]
    %341 = vmatprep.subr.mxu0 0.0
    %342 = vmatpush1.msra.mxu0 %v325
    %343 = vmatprep.subr.mxu0 0.0
    %344 = vmatpush1.msra.mxu0 %v326
    %345 = vmatprep.subr.mxu0 0.0
    %346 = vmatpush1.msra.mxu0 %v327
    %347 = vmatprep.subr.mxu0 0.0
    %348 = vmatpush1.msra.mxu0 %v328
    %349 = vmatprep.subr.mxu0 0.0
    %350 = vmatpush1.msra.mxu0 %v329
    %351 = vmatprep.subr.mxu0 0.0
    %352 = vmatpush1.msra.mxu0 %v330
    %353 = vmatprep.subr.mxu0 0.0
    %354 = vmatpush1.msra.mxu0 %v331
    %355 = vmatprep.subr.mxu0 0.0
    %356 = vmatpush1.msra.mxu0 %v332
    %357 = vmatprep.subr.mxu0 0.0
    %358 = vmatpush1.msra.mxu0 %v333
    %359 = vmatprep.subr.mxu0 0.0
    %360 = vmatpush1.msra.mxu0 %v334
    %361 = vmatprep.subr.mxu0 0.0
    %362 = vmatpush1.msra.mxu0 %v335
    %363 = vmatprep.subr.mxu0 0.0
    %364 = vmatpush1.msra.mxu0 %v336
    %365 = vmatprep.subr.mxu0 0.0
    %366 = vmatpush1.msra.mxu0 %v337
    %367 = vmatprep.subr.mxu0 0.0
    %368 = vmatpush1.msra.mxu0 %v338
    %369 = vmatprep.subr.mxu0 0.0
    %370 = vmatpush1.msra.mxu0 %v339
    %371 = vmatprep.subr.mxu0 0.0
    %372 = vmatpush1.msra.mxu0 %v340
    %373 = vmatprep.subr.mxu0 0.0
    %374 = vmatpush1.msra.mxu0 0.0
    %375 = vmatprep.subr.mxu0 0.0
    %376 = vmatpush1.msra.mxu0 0.0
    %377 = vmatprep.subr.mxu0 0.0
    %378 = vmatpush1.msra.mxu0 0.0
    %379 = vmatprep.subr.mxu0 0.0
    %380 = vmatpush1.msra.mxu0 0.0
    %381 = vmatprep.subr.mxu0 0.0
    %382 = vmatpush1.msra.mxu0 0.0
    %383 = vmatprep.subr.mxu0 0.0
    %384 = vmatpush1.msra.mxu0 0.0
    %385 = vmatprep.subr.mxu0 0.0
    %386 = vmatpush1.msra.mxu0 0.0
    %387 = vmatprep.subr.mxu0 0.0
    %388 = vmatpush1.msra.mxu0 0.0
    %389 = vmatprep.subr.mxu0 0.0
    %390 = vmatpush1.msra.mxu0 0.0
    %391 = vmatprep.subr.mxu0 0.0
    %392 = vmatpush1.msra.mxu0 0.0
    %393 = vmatprep.subr.mxu0 0.0
    %394 = vmatpush1.msra.mxu0 0.0
    %395 = vmatprep.subr.mxu0 0.0
    %396 = vmatpush1.msra.mxu0 0.0
    %397 = vmatprep.subr.mxu0 0.0
    %398 = vmatpush1.msra.mxu0 0.0
    %399 = vmatprep.subr.mxu0 0.0
    %400 = vmatpush1.msra.mxu0 0.0
    %401 = vmatprep.subr.mxu0 0.0
    %402 = vmatpush1.msra.mxu0 0.0
    %403 = vmatprep.subr.mxu0 0.0
    %404 = vmatpush1.msra.mxu0 0.0
    %405 = vmatprep.mubr.f32.mxu0 0.0
    %406 = vmatmul.mubr.f32.gmra.mrb[0].mxu0 %v221
    %v407 = vpop.f32.mrb[0].mxu0
    %v408 = vadd.f32 0.0, %v407
    %v409 = vpop.f32.mrb[0].mxu0
    %410 = vdwg.mxu0
    %v411 = vadd.f32 %v201, %v408
    %v412 = vmax.f32 %v411, 0.0
    %v413 = vld [vmem:[#allocation10] sm:$0xff]
    %v414 = vld [vmem:[#allocation10 + $0x8] sm:$0xff]
    %v415 = vld [vmem:[#allocation10 + $0x10] sm:$0xff]
    %v416 = vld [vmem:[#allocation10 + $0x18] sm:$0xff]
    %v417 = vld [vmem:[#allocation10 + $0x20] sm:$0xff]
    %v418 = vld [vmem:[#allocation10 + $0x28] sm:$0xff]
    %v419 = vld [vmem:[#allocation10 + $0x30] sm:$0xff]
    %v420 = vld [vmem:[#allocation10 + $0x38] sm:$0xff]
    %v421 = vld [vmem:[#allocation10 + $0x40] sm:$0xff]
    %v422 = vld [vmem:[#allocation10 + $0x48] sm:$0xff]
    %v423 = vld [vmem:[#allocation10 + $0x50] sm:$0xff]
    %v424 = vld [vmem:[#allocation10 + $0x58] sm:$0xff]
    %v425 = vld [vmem:[#allocation10 + $0x60] sm:$0xff]
    %v426 = vld [vmem:[#allocation10 + $0x68] sm:$0xff]
    %v427 = vld [vmem:[#allocation10 + $0x70] sm:$0xff]
    %v428 = vld [vmem:[#allocation10 + $0x78] sm:$0xff]
    %v429 = vld [vmem:[%s6] sm:$0x1]
    %v431 = vlaneseq
    %v432 = vshrl.u32 %v431, 7
    %v433 = vsub.s32 0, %v432
    %v434 = vrot.slane %v429, %v433
    %436 = vmatprep.subr.mxu0 0.0
    %437 = vmatpush1.msra.mxu0 %v413
    %438 = vmatprep.subr.mxu0 0.0
    %439 = vmatpush1.msra.mxu0 %v414
    %440 = vmatprep.subr.mxu0 0.0
    %441 = vmatpush1.msra.mxu0 %v415
    %442 = vmatprep.subr.mxu0 0.0
    %443 = vmatpush1.msra.mxu0 %v416
    %444 = vmatprep.subr.mxu0 0.0
    %445 = vmatpush1.msra.mxu0 %v417
    %446 = vmatprep.subr.mxu0 0.0
    %447 = vmatpush1.msra.mxu0 %v418
    %448 = vmatprep.subr.mxu0 0.0
    %449 = vmatpush1.msra.mxu0 %v419
    %450 = vmatprep.subr.mxu0 0.0
    %451 = vmatpush1.msra.mxu0 %v420
    %452 = vmatprep.subr.mxu0 0.0
    %453 = vmatpush1.msra.mxu0 %v421
    %454 = vmatprep.subr.mxu0 0.0
    %455 = vmatpush1.msra.mxu0 %v422
    %456 = vmatprep.subr.mxu0 0.0
    %457 = vmatpush1.msra.mxu0 %v423
    %458 = vmatprep.subr.mxu0 0.0
    %459 = vmatpush1.msra.mxu0 %v424
    %460 = vmatprep.subr.mxu0 0.0
    %461 = vmatpush1.msra.mxu0 %v425
    %462 = vmatprep.subr.mxu0 0.0
    %463 = vmatpush1.msra.mxu0 %v426
    %464 = vmatprep.subr.mxu0 0.0
    %465 = vmatpush1.msra.mxu0 %v427
    %466 = vmatprep.subr.mxu0 0.0
    %467 = vmatpush1.msra.mxu0 %v428
    %468 = vmatprep.subr.mxu0 0.0
    %469 = vmatpush1.msra.mxu0 0.0
    %470 = vmatprep.subr.mxu0 0.0
    %471 = vmatpush1.msra.mxu0 0.0
    %472 = vmatprep.subr.mxu0 0.0
    %473 = vmatpush1.msra.mxu0 0.0
    %474 = vmatprep.subr.mxu0 0.0
    %475 = vmatpush1.msra.mxu0 0.0
    %476 = vmatprep.subr.mxu0 0.0
    %477 = vmatpush1.msra.mxu0 0.0
    %478 = vmatprep.subr.mxu0 0.0
    %479 = vmatpush1.msra.mxu0 0.0
    %480 = vmatprep.subr.mxu0 0.0
    %481 = vmatpush1.msra.mxu0 0.0
    %482 = vmatprep.subr.mxu0 0.0
    %483 = vmatpush1.msra.mxu0 0.0
    %484 = vmatprep.subr.mxu0 0.0
    %485 = vmatpush1.msra.mxu0 0.0
    %486 = vmatprep.subr.mxu0 0.0
    %487 = vmatpush1.msra.mxu0 0.0
    %488 = vmatprep.subr.mxu0 0.0
    %489 = vmatpush1.msra.mxu0 0.0
    %490 = vmatprep.subr.mxu0 0.0
    %491 = vmatpush1.msra.mxu0 0.0
    %492 = vmatprep.subr.mxu0 0.0
    %493 = vmatpush1.msra.mxu0 0.0
    %494 = vmatprep.subr.mxu0 0.0
    %495 = vmatpush1.msra.mxu0 0.0
    %496 = vmatprep.subr.mxu0 0.0
    %497 = vmatpush1.msra.mxu0 0.0
    %498 = vmatprep.subr.mxu0 0.0
    %499 = vmatpush1.msra.mxu0 0.0
    %500 = vmatprep.mubr.f32.mxu0 0.0
    %501 = vmatmul.mubr.f32.gmra.mrb[0].mxu0 %v412
    %v502 = vpop.f32.mrb[0].mxu0
    %v503 = vadd.f32 %v434, %v502
    %v504 = vpop.f32.mrb[0].mxu0
    %505 = vdwg.mxu0
    %506 = vst [vmem:[#allocation11] sm:$0xff] %v503
    // Predicated region
    $region57: #{tpu_custom_call.1} parent=1 // pred_check
      _
    $region58: #{tpu_custom_call.1} parent=1 // pred_check_branch
      %508 = sbr.rel (0) target = $region60
    $region59: #{tpu_custom_call.1} parent=1 // pred_region
      %s510 = ssub.s32 128, 128
      %511 = vsyncadd [#allocation4], %s510
      %s513 = sshll.u32 [#allocation11], 4
      %s514 = int_to_ptr.vmem [resolvable:$true] %s513
      %516 = dma.vmem_to_hbm [thread:$0]  %s514, 128, %s7, [#allocation4]
    $region60: #{tpu_custom_call.1} parent=1 // pred_fallthru
      _
    // Predicated region
    $region61: #{tpu_custom_call.1} parent=1 // pred_check
      _
    $region62: #{tpu_custom_call.1} parent=1 // pred_check_branch
      %518 = sbr.rel (0) target = $region64
    $region63: #{tpu_custom_call.1} parent=1 // pred_region
      %519 = dma.done [#allocation4], 128
    $region64: #{tpu_custom_call.1} parent=1 // pred_fallthru
      _
    %520 = vsyncpa [#allocation3], 1
    %521 = vsyncpa [#allocation6], 1
    %522 = vsyncpa [#allocation9], 1
    %523 = vsyncpa [#allocation4], 1

</llo_original>
